<compile_context>
chip_gen: v7x
topology: tpu7x:2x2x1
jax: 0.10.0
libtpu: 0.0.40
codegen_flags: <defaults>
</compile_context>

<pallas_src>
import functools

import jax
import jax.numpy as jnp
from jax.experimental import pallas as pl
from jax.experimental.pallas import tpu as pltpu


def _sp_gram_kernel(s_ref, t_ref, gs_ref, gt_ref, *, D, tk, apply_mask):
    """Accumulate partial Gram matrices for one (chunk, k-tile) grid point."""
    j = pl.program_id(1)

    @pl.when(j == 0)
    def _():
        gs_ref[...] = jnp.zeros_like(gs_ref)
        gt_ref[...] = jnp.zeros_like(gt_ref)

    s = s_ref[...]          # (B, tk) in native dtype
    t = t_ref[...]
    if apply_mask:
        # Global column index of this tile; zero out columns beyond D.  This
        # covers both the ragged last tile (D % tk != 0) and the phantom tile
        # a chunk may see when the tile count is odd (its index_map is
        # clamped, so all of its columns land >= D and get zeroed here).
        gk = pl.program_id(0) * pl.num_programs(1) + j
        col = gk * tk + jax.lax.broadcasted_iota(jnp.int32, s.shape, 1)
        valid = col < D
        s = jnp.where(valid, s, jnp.zeros_like(s))
        t = jnp.where(valid, t, jnp.zeros_like(t))

    # Contract the last dims (x @ x.T) on the MXU without materializing a
    # transpose; accumulate in f32.
    dn = (((1,), (1,)), ((), ()))
    gs_ref[...] += jax.lax.dot_general(s, s, dn, preferred_element_type=jnp.float32)
    gt_ref[...] += jax.lax.dot_general(t, t, dn, preferred_element_type=jnp.float32)


def sp_loss(fm_s, fm_t, *, reduction="mean", block_bytes=4 * 1024 * 1024):
    """Pallas implementation of the SP module forward pass."""
    B = fm_s.shape[0]
    assert fm_t.shape[0] == B, "student/teacher batch must match"
    s2 = fm_s.reshape(B, -1)          # glue: torch .view(B, -1) (metadata only)
    t2 = fm_t.reshape(B, -1)
    D = s2.shape[1]
    assert t2.shape[1] == D, "student/teacher flattened dims must match"

    dtype = jnp.promote_types(s2.dtype, t2.dtype)
    s2 = s2.astype(dtype)
    t2 = t2.astype(dtype)
    itemsize = jnp.dtype(dtype).itemsize

    # ---- k-tile selection --------------------------------------------------
    # ~4 MiB per input per block: big enough to sit near the HBM roofline,
    # small enough that the double-buffer pipeline overlaps DMA with the MXU
    # and the whole footprint fits v7x's 64 MiB VMEM.
    d128 = pl.cdiv(D, 128) * 128
    tk_cap = max(128, ((block_bytes // max(1, B * itemsize)) // 128) * 128)
    tk = int(min(d128, tk_cap))
    n_k = pl.cdiv(D, tk)

    # Split the reduction across two chunks (maps to the two TensorCores on
    # v7x via the leading "parallel" grid axis; harmless on v5e/v6e).
    num_chunks = 2 if n_k >= 2 else 1
    nk_per_chunk = pl.cdiv(n_k, num_chunks)
    apply_mask = (D % tk != 0) or (num_chunks * nk_per_chunk != n_k)

    # VMEM: 2 inputs x 2 buffers x (B, tk) + two resident (B, B) f32 outputs
    # (counted double-buffered for safety) + headroom.
    vmem_need = 2 * 2 * B * tk * itemsize + 2 * 2 * B * B * 4
    vmem_limit = int(min(max(vmem_need + (8 << 20), 32 << 20), 112 << 20))
    # TODO(synk): for B >~ 2000 the (B, B) f32 accumulators no longer fit v7x
    # VMEM; that regime would need a row-blocked Gram path.

    def in_index_map(c, j):
        # Clamp so a phantom tile (odd tile count) reads a valid block; its
        # contribution is zeroed by the in-kernel column mask.
        return (0, jnp.minimum(c * nk_per_chunk + j, n_k - 1))

    kernel = functools.partial(_sp_gram_kernel, D=D, tk=tk, apply_mask=apply_mask)

    flops = 4 * B * B * D                                  # two Grams
    bytes_accessed = 2 * B * D * itemsize + 2 * num_chunks * B * B * 4

    gs_parts, gt_parts = pl.pallas_call(
        kernel,
        out_shape=(
            jax.ShapeDtypeStruct((num_chunks, B, B), jnp.float32),
            jax.ShapeDtypeStruct((num_chunks, B, B), jnp.float32),
        ),
        grid_spec=pltpu.PrefetchScalarGridSpec(
            num_scalar_prefetch=0,
            grid=(num_chunks, nk_per_chunk),
            in_specs=[
                pl.BlockSpec((B, tk), in_index_map),
                pl.BlockSpec((B, tk), in_index_map),
            ],
            out_specs=(
                pl.BlockSpec((None, B, B), lambda c, j: (c, 0, 0)),
                pl.BlockSpec((None, B, B), lambda c, j: (c, 0, 0)),
            ),
        ),
        compiler_params=pltpu.CompilerParams(
            dimension_semantics=("parallel", "arbitrary"),
            vmem_limit_bytes=vmem_limit,
        ),
        cost_estimate=pl.CostEstimate(
            flops=flops, transcendentals=0, bytes_accessed=bytes_accessed),
    )(s2, t2)

    # Tiny (B, B) epilogue in plain JAX: combine per-chunk partial Grams,
    # row-wise L2-normalize (same eps clamp as F.normalize), MSE.
    gs = jnp.sum(gs_parts, axis=0)
    gt = jnp.sum(gt_parts, axis=0)
    # 1 / max(||row||, 1e-12) == rsqrt(max(sum(row^2), 1e-24))
    inv_s = jax.lax.rsqrt(jnp.maximum(jnp.sum(gs * gs, axis=1, keepdims=True), 1e-24))
    inv_t = jax.lax.rsqrt(jnp.maximum(jnp.sum(gt * gt, axis=1, keepdims=True), 1e-24))
    sq = (gs * inv_s - gt * inv_t) ** 2
    return jnp.mean(sq) if reduction == "mean" else jnp.sum(sq)


def _sp_ref(fm_s, fm_t, reduction="mean"):
    """Pure-JAX reference mirroring the PyTorch module."""
    B = fm_s.shape[0]
    s = fm_s.reshape(B, -1).astype(jnp.float32)
    t = fm_t.reshape(B, -1).astype(jnp.float32)
    gs = s @ s.T
    gt = t @ t.T
    gs_n = gs / jnp.maximum(jnp.linalg.norm(gs, axis=1, keepdims=True), 1e-12)
    gt_n = gt / jnp.maximum(jnp.linalg.norm(gt, axis=1, keepdims=True), 1e-12)
    sq = (gs_n - gt_n) ** 2
    return jnp.mean(sq) if reduction == "mean" else jnp.sum(sq)


if __name__ == "__main__":
    key = jax.random.PRNGKey(0)
    k1, k2, k3, k4 = jax.random.split(key, 4)

    def _check(loss, ref):
        assert jnp.isfinite(loss), "non-finite loss"
        tol = 1e-5 + 1e-4 * abs(float(ref))
        assert abs(float(loss) - float(ref)) < tol, (float(loss), float(ref))

    # Case 1: batch=8, channels=4, spatial=16x16 -> D=1024 (single k-tile).
    fm_s = jax.random.normal(k1, (8, 4, 16, 16), dtype=jnp.float32)
    fm_t = jax.random.normal(k2, (8, 4, 16, 16), dtype=jnp.float32)
    _check(jax.block_until_ready(sp_loss(fm_s, fm_t)),
           jax.block_until_ready(_sp_ref(fm_s, fm_t)))

    # Case 2: odd tile count -> exercises the 2-way reduction split and the
    # phantom-tile clamp + mask path (forced small k-tiles).
    fm_s2 = jax.random.normal(k3, (8, 3, 16, 16), dtype=jnp.float32)   # D = 768
    fm_t2 = jax.random.normal(k4, (8, 3, 16, 16), dtype=jnp.float32)
    _check(jax.block_until_ready(sp_loss(fm_s2, fm_t2, block_bytes=8 * 1024)),
           jax.block_until_ready(_sp_ref(fm_s2, fm_t2)))

    # Case 3: ragged last tile (D not a multiple of the k-tile or of 128).
    fm_s3 = jax.random.normal(k1, (8, 4, 15, 15), dtype=jnp.float32)   # D = 900
    fm_t3 = jax.random.normal(k2, (8, 4, 15, 15), dtype=jnp.float32)
    _check(jax.block_until_ready(sp_loss(fm_s3, fm_t3, block_bytes=8 * 1024)),
           jax.block_until_ready(_sp_ref(fm_s3, fm_t3)))

    print("KERNEL_OK")
</pallas_src>

<mosaic_0001>
module attributes {stable_mosaic.version = 11 : i64} {
  func.func @_sp_gram_kernel(%arg0: i32, %arg1: i32, %arg2: memref<8x1024xf32, #tpu.memory_space<vmem>>, %arg3: memref<8x1024xf32, #tpu.memory_space<vmem>>, %arg4: memref<1x8x8xf32, #tpu.memory_space<vmem>>, %arg5: memref<1x8x8xf32, #tpu.memory_space<vmem>>) attributes {dimension_semantics = [#tpu.dimension_semantics<parallel>, #tpu.dimension_semantics<arbitrary>], iteration_bounds = array<i64: 1, 1>, scalar_prefetch = 0 : i64, scratch_operands = 0 : i64, tpu.core_type = #tpu.core_type<tc>, window_params = [{transform_indices = @transform_0, window_bounds = array<i64: 8, 1024>}, {transform_indices = @transform_1, window_bounds = array<i64: 8, 1024>}, {transform_indices = @transform_2, window_bounds = array<i64: 1, 8, 8>}, {transform_indices = @transform_3, window_bounds = array<i64: 1, 8, 8>}]} {
    %c0_i32 = arith.constant 0 : i32
    %0 = arith.cmpi eq, %arg1, %c0_i32 : i32
    %1 = arith.extui %0 : i1 to i32
    %c0_i32_0 = arith.constant 0 : i32
    %2 = arith.cmpi ne, %1, %c0_i32_0 : i32
    scf.if %2 {
      %cst_17 = arith.constant 0.000000e+00 : f32
      %19 = vector.broadcast %cst_17 : f32 to vector<8x8xf32>
      %c0_18 = arith.constant 0 : index
      %c0_19 = arith.constant 0 : index
      %c0_20 = arith.constant 0 : index
      %20 = vector.load %arg4[%c0_18, %c0_19, %c0_20] : memref<1x8x8xf32, #tpu.memory_space<vmem>>, vector<1x8x8xf32>
      %21 = vector.shape_cast %20 : vector<1x8x8xf32> to vector<8x8xf32>
      %22 = vector.shape_cast %19 : vector<8x8xf32> to vector<1x8x8xf32>
      tpu.vector_store %arg4[%c0_18, %c0_19, %c0_20], %22 {strides = array<i32>} : memref<1x8x8xf32, #tpu.memory_space<vmem>>, vector<1x8x8xf32>,
      %cst_21 = arith.constant 0.000000e+00 : f32
      %23 = vector.broadcast %cst_21 : f32 to vector<8x8xf32>
      %c0_22 = arith.constant 0 : index
      %c0_23 = arith.constant 0 : index
      %c0_24 = arith.constant 0 : index
      %24 = vector.load %arg5[%c0_22, %c0_23, %c0_24] : memref<1x8x8xf32, #tpu.memory_space<vmem>>, vector<1x8x8xf32>
      %25 = vector.shape_cast %24 : vector<1x8x8xf32> to vector<8x8xf32>
      %26 = vector.shape_cast %23 : vector<8x8xf32> to vector<1x8x8xf32>
      tpu.vector_store %arg5[%c0_22, %c0_23, %c0_24], %26 {strides = array<i32>} : memref<1x8x8xf32, #tpu.memory_space<vmem>>, vector<1x8x8xf32>,
    } else {
    }
    %c0 = arith.constant 0 : index
    %c0_1 = arith.constant 0 : index
    %3 = vector.load %arg2[%c0, %c0_1] : memref<8x1024xf32, #tpu.memory_space<vmem>>, vector<8x1024xf32>
    %c0_2 = arith.constant 0 : index
    %c0_3 = arith.constant 0 : index
    %4 = vector.load %arg3[%c0_2, %c0_3] : memref<8x1024xf32, #tpu.memory_space<vmem>>, vector<8x1024xf32>
    %c0_4 = arith.constant 0 : index
    %c0_5 = arith.constant 0 : index
    %c0_6 = arith.constant 0 : index
    %5 = vector.load %arg4[%c0_4, %c0_5, %c0_6] : memref<1x8x8xf32, #tpu.memory_space<vmem>>, vector<1x8x8xf32>
    %6 = vector.shape_cast %5 : vector<1x8x8xf32> to vector<8x8xf32>
    %cst = arith.constant dense<0.000000e+00> : vector<8x8xf32>
    %7 = tpu.matmul %3, %3, %cst {dimension_numbers = #tpu.dot_dimension_numbers<[1], [1], [0], [0], [0, 0, 1, 0], [], []>} : vector<8x1024xf32>, vector<8x1024xf32>, vector<8x8xf32> -> vector<8x8xf32>
    %8 = arith.addf %6, %7 : vector<8x8xf32>
    %c0_7 = arith.constant 0 : index
    %c0_8 = arith.constant 0 : index
    %c0_9 = arith.constant 0 : index
    %9 = vector.load %arg4[%c0_7, %c0_8, %c0_9] : memref<1x8x8xf32, #tpu.memory_space<vmem>>, vector<1x8x8xf32>
    %10 = vector.shape_cast %9 : vector<1x8x8xf32> to vector<8x8xf32>
    %11 = vector.shape_cast %8 : vector<8x8xf32> to vector<1x8x8xf32>
    tpu.vector_store %arg4[%c0_7, %c0_8, %c0_9], %11 {strides = array<i32>} : memref<1x8x8xf32, #tpu.memory_space<vmem>>, vector<1x8x8xf32>,
    %c0_10 = arith.constant 0 : index
    %c0_11 = arith.constant 0 : index
    %c0_12 = arith.constant 0 : index
    %12 = vector.load %arg5[%c0_10, %c0_11, %c0_12] : memref<1x8x8xf32, #tpu.memory_space<vmem>>, vector<1x8x8xf32>
    %13 = vector.shape_cast %12 : vector<1x8x8xf32> to vector<8x8xf32>
    %cst_13 = arith.constant dense<0.000000e+00> : vector<8x8xf32>
    %14 = tpu.matmul %4, %4, %cst_13 {dimension_numbers = #tpu.dot_dimension_numbers<[1], [1], [0], [0], [0, 0, 1, 0], [], []>} : vector<8x1024xf32>, vector<8x1024xf32>, vector<8x8xf32> -> vector<8x8xf32>
    %15 = arith.addf %13, %14 : vector<8x8xf32>
    %c0_14 = arith.constant 0 : index
    %c0_15 = arith.constant 0 : index
    %c0_16 = arith.constant 0 : index
    %16 = vector.load %arg5[%c0_14, %c0_15, %c0_16] : memref<1x8x8xf32, #tpu.memory_space<vmem>>, vector<1x8x8xf32>
    %17 = vector.shape_cast %16 : vector<1x8x8xf32> to vector<8x8xf32>
    %18 = vector.shape_cast %15 : vector<8x8xf32> to vector<1x8x8xf32>
    tpu.vector_store %arg5[%c0_14, %c0_15, %c0_16], %18 {strides = array<i32>} : memref<1x8x8xf32, #tpu.memory_space<vmem>>, vector<1x8x8xf32>,
    return
  }
  func.func @transform_0(%arg0: i32, %arg1: i32) -> (i32, i32) {
    %c1_i32 = arith.constant 1 : i32
    %0 = arith.muli %arg0, %c1_i32 : i32
    %1 = arith.addi %0, %arg1 : i32
    %c0_i32 = arith.constant 0 : i32
    %2 = arith.minsi %1, %c0_i32 : i32
    %c0_i32_0 = arith.constant 0 : i32
    %c0_i32_1 = arith.constant 0 : i32
    return %c0_i32_0, %2 : i32, i32
  }
  func.func @transform_1(%arg0: i32, %arg1: i32) -> (i32, i32) {
    %c1_i32 = arith.constant 1 : i32
    %0 = arith.muli %arg0, %c1_i32 : i32
    %1 = arith.addi %0, %arg1 : i32
    %c0_i32 = arith.constant 0 : i32
    %2 = arith.minsi %1, %c0_i32 : i32
    %c0_i32_0 = arith.constant 0 : i32
    %c0_i32_1 = arith.constant 0 : i32
    return %c0_i32_0, %2 : i32, i32
  }
  func.func @transform_2(%arg0: i32, %arg1: i32) -> (i32, i32, i32) {
    %c0_i32 = arith.constant 0 : i32
    %c0_i32_0 = arith.constant 0 : i32
    %c0_i32_1 = arith.constant 0 : i32
    return %arg0, %c0_i32, %c0_i32_0 : i32, i32, i32
  }
  func.func @transform_3(%arg0: i32, %arg1: i32) -> (i32, i32, i32) {
    %c0_i32 = arith.constant 0 : i32
    %c0_i32_0 = arith.constant 0 : i32
    %c0_i32_1 = arith.constant 0 : i32
    return %arg0, %c0_i32, %c0_i32_0 : i32, i32, i32
  }
}

</mosaic_0001>

<llo_original>
// kernel: tpu_custom_call.1
$region0: #{tpu_custom_call.1}
  #allocation0 [shape = 'u32[]', space=smem, size = 0x4, offset = 0x4, fixed_abs, tag = 'smem constant byte address 0x4 - core index']
  #allocation1 [shape = 'u32[144,128]{1,0:T(1,128)}', space=vmem, size = 0x12000, scoped, tag = 'internal scratch']
  %s0 = inlined_call_operand.hbm [shape: f32[8,1024], index: 0, kind: input, shape index: {}]
  %s1 = inlined_call_operand.hbm [shape: f32[8,1024], index: 1, kind: input, shape index: {}]
  %s2 = inlined_call_operand.hbm [shape: f32[1,8,8], index: 2, kind: output, shape index: {0}]
  %s3 = inlined_call_operand.hbm [shape: f32[1,8,8], index: 3, kind: output, shape index: {1}]
  %4 = xla_tuple %s2, %s3
  %s5 = sld [smem:[#allocation0]]
  $region38: #{tpu_custom_call.1} parent=0
    _
  %s7 = ssub.s32 1, %s5
  %s8 = scalar_select 0, %s7, %s5
  $region1: #{tpu_custom_call.1} parent=0
    #allocation2 [shape = 'u8[32768]{0}', space=vmem, size = 0x8000, scoped, tag = 'input window, operand 0, single buffered']
    #allocation3 [shape = 's32[1]{0}', space=sflag, size = 0x4, scoped, tag = 'scoped memory for tpu_custom_call.1']
    #allocation4 [shape = 's32[1]{0}', space=sflag, size = 0x4, scoped, tag = 'scoped memory for tpu_custom_call.1']
    #allocation5 [shape = 'u8[32768]{0}', space=vmem, size = 0x8000, scoped, tag = 'input window, operand 1, single buffered']
    #allocation6 [shape = 's32[1]{0}', space=sflag, size = 0x4, scoped, tag = 'scoped memory for tpu_custom_call.1']
    #allocation7 [shape = 'u8[4096]{0}', space=vmem, size = 0x1000, scoped, tag = 'output window, operand 0, single buffered']
    #allocation8 [shape = 'u8[4096]{0}', space=vmem, size = 0x1000, scoped, tag = 'output window, operand 1, single buffered']
    #allocation9 [shape = 's32[1]{0}', space=sflag, size = 0x4, scoped, tag = 'scoped memory for tpu_custom_call.1']
    %9 = vsyncpa [#allocation3], 0
    %10 = vsyncpa [#allocation6], 0
    %11 = vsyncpa [#allocation4], 0
    %12 = vsyncpa [#allocation9], 0
    // Predicated region
    $region2: #{tpu_custom_call.1} parent=1 // pred_check
      _
    $region3: #{tpu_custom_call.1} parent=1 // pred_check_branch
      %14 = sbr.rel (0) target = $region5
    $region4: #{tpu_custom_call.1} parent=1 // pred_region
      %s15 = sadd.s32 0, 0
      %p16 = scmp.lt.s32.totalorder %s15, 0
      %s17 = scalar_select %p16, %s15, 0
      %s18 = smul.u32 8, %s17
      %s20 = ssub.s32 1024, 1024
      %21 = vsyncadd [#allocation3], %s20
      %s22 = smul.addr %s18, 128
      %s23 = scalar_lea.hbm %s0, %s22
      %s25 = sshll.u32 [#allocation2], 4
      %s26 = int_to_ptr.vmem [resolvable:$true] %s25
      %28 = dma.hbm_to_vmem [thread:$0]  %s23, 1024, %s26, [#allocation3]
    $region5: #{tpu_custom_call.1} parent=1 // pred_fallthru
      _
    // Predicated region
    $region6: #{tpu_custom_call.1} parent=1 // pred_check
      _
    $region7: #{tpu_custom_call.1} parent=1 // pred_check_branch
      %30 = sbr.rel (0) target = $region9
    $region8: #{tpu_custom_call.1} parent=1 // pred_region
      %s31 = sadd.s32 0, 0
      %p32 = scmp.lt.s32.totalorder %s31, 0
      %s33 = scalar_select %p32, %s31, 0
      %s34 = smul.u32 8, %s33
      %s36 = ssub.s32 1024, 1024
      %37 = vsyncadd [#allocation6], %s36
      %s38 = smul.addr %s34, 128
      %s39 = scalar_lea.hbm %s1, %s38
      %s41 = sshll.u32 [#allocation5], 4
      %s42 = int_to_ptr.vmem [resolvable:$true] %s41
      %44 = dma.hbm_to_vmem [thread:$0]  %s39, 1024, %s42, [#allocation6]
    $region9: #{tpu_custom_call.1} parent=1 // pred_fallthru
      _
    // Predicated region
    $region10: #{tpu_custom_call.1} parent=1 // pred_check
      _
    $region11: #{tpu_custom_call.1} parent=1 // pred_check_branch
      %46 = sbr.rel (0) target = $region13
    $region12: #{tpu_custom_call.1} parent=1 // pred_region
      %47 = dma.done [#allocation3], 1024
    $region13: #{tpu_custom_call.1} parent=1 // pred_fallthru
      _
    // Predicated region
    $region14: #{tpu_custom_call.1} parent=1 // pred_check
      _
    $region15: #{tpu_custom_call.1} parent=1 // pred_check_branch
      %49 = sbr.rel (0) target = $region17
    $region16: #{tpu_custom_call.1} parent=1 // pred_region
      %50 = dma.done [#allocation6], 1024
    $region17: #{tpu_custom_call.1} parent=1 // pred_fallthru
      _
    %s51 = sadd.s32 0, 0
    %p52 = scmp.lt.s32.totalorder %s51, 0
    %s53 = scalar_select %p52, %s51, 0
    %s54 = smul.u32 8, %s53
    %s55 = sadd.s32 0, 0
    %p56 = scmp.lt.s32.totalorder %s55, 0
    %s57 = scalar_select %p56, %s55, 0
    %s58 = smul.u32 8, %s57
    %p59 = scmp.eq.s32.totalorder 0, 0
    // Predicated region
    $region18: #{tpu_custom_call.1} parent=1 // pred_check
      %p60 = pneg %p59
    $region19: #{tpu_custom_call.1} parent=1 // pred_check_branch
      %62 = sbr.rel (%p60) target = $region21
    $region20: #{tpu_custom_call.1} parent=1 // pred_region
      %vm63 = vcmask 64512
      %64 = vst.msk [vmem:[#allocation7] sm:$0xff] %vm63, 0.0
      %65 = vst.msk [vmem:[#allocation8] sm:$0xff] %vm63, 0.0
    $region21: #{tpu_custom_call.1} parent=1 // pred_fallthru
      _
    %v66 = vld [vmem:[#allocation2] sm:$0xff]
    %v67 = vld [vmem:[#allocation2 + $0x8] sm:$0xff]
    %v68 = vld [vmem:[#allocation2 + $0x10] sm:$0xff]
    %v69 = vld [vmem:[#allocation2 + $0x18] sm:$0xff]
    %v70 = vld [vmem:[#allocation2 + $0x20] sm:$0xff]
    %v71 = vld [vmem:[#allocation2 + $0x28] sm:$0xff]
    %v72 = vld [vmem:[#allocation2 + $0x30] sm:$0xff]
    %v73 = vld [vmem:[#allocation2 + $0x38] sm:$0xff]
    %v74 = vld [vmem:[#allocation5] sm:$0xff]
    %v75 = vld [vmem:[#allocation5 + $0x8] sm:$0xff]
    %v76 = vld [vmem:[#allocation5 + $0x10] sm:$0xff]
    %v77 = vld [vmem:[#allocation5 + $0x18] sm:$0xff]
    %v78 = vld [vmem:[#allocation5 + $0x20] sm:$0xff]
    %v79 = vld [vmem:[#allocation5 + $0x28] sm:$0xff]
    %v80 = vld [vmem:[#allocation5 + $0x30] sm:$0xff]
    %v81 = vld [vmem:[#allocation5 + $0x38] sm:$0xff]
    %v82 = vld [vmem:[#allocation7] sm:$0xff]
    %83 = vmatprep.subr.mxu0 %v67
    %84 = vmatpush1.xpose.msra.mxu0 %v66
    %85 = vmatprep.subr.mxu0 0.0
    %86 = vmatpush1.xpose.msra.mxu0 0.0
    %87 = vmatprep.subr.mxu0 0.0
    %88 = vmatpush1.xpose.msra.mxu0 0.0
    %89 = vmatprep.subr.mxu0 0.0
    %90 = vmatpush1.xpose.msra.mxu0 0.0
    %91 = vmatprep.subr.mxu0 0.0
    %92 = vmatpush1.xpose.msra.mxu0 0.0
    %93 = vmatprep.subr.mxu0 0.0
    %94 = vmatpush1.xpose.msra.mxu0 0.0
    %95 = vmatprep.subr.mxu0 0.0
    %96 = vmatpush1.xpose.msra.mxu0 0.0
    %97 = vmatprep.subr.mxu0 0.0
    %98 = vmatpush1.xpose.msra.mxu0 0.0
    %99 = vmatprep.subr.mxu0 0.0
    %100 = vmatpush1.xpose.msra.mxu0 0.0
    %101 = vmatprep.subr.mxu0 0.0
    %102 = vmatpush1.xpose.msra.mxu0 0.0
    %103 = vmatprep.subr.mxu0 0.0
    %104 = vmatpush1.xpose.msra.mxu0 0.0
    %105 = vmatprep.subr.mxu0 0.0
    %106 = vmatpush1.xpose.msra.mxu0 0.0
    %107 = vmatprep.subr.mxu0 0.0
    %108 = vmatpush1.xpose.msra.mxu0 0.0
    %109 = vmatprep.subr.mxu0 0.0
    %110 = vmatpush1.xpose.msra.mxu0 0.0
    %111 = vmatprep.subr.mxu0 0.0
    %112 = vmatpush1.xpose.msra.mxu0 0.0
    %113 = vmatprep.subr.mxu0 0.0
    %114 = vmatpush1.xpose.msra.mxu0 0.0
    %115 = vmatprep.subr.mxu0 0.0
    %116 = vmatpush1.xpose.msra.mxu0 0.0
    %117 = vmatprep.subr.mxu0 0.0
    %118 = vmatpush1.xpose.msra.mxu0 0.0
    %119 = vmatprep.subr.mxu0 0.0
    %120 = vmatpush1.xpose.msra.mxu0 0.0
    %121 = vmatprep.subr.mxu0 0.0
    %122 = vmatpush1.xpose.msra.mxu0 0.0
    %123 = vmatprep.subr.mxu0 0.0
    %124 = vmatpush1.xpose.msra.mxu0 0.0
    %125 = vmatprep.subr.mxu0 0.0
    %126 = vmatpush1.xpose.msra.mxu0 0.0
    %127 = vmatprep.subr.mxu0 0.0
    %128 = vmatpush1.xpose.msra.mxu0 0.0
    %129 = vmatprep.subr.mxu0 0.0
    %130 = vmatpush1.xpose.msra.mxu0 0.0
    %131 = vmatprep.subr.mxu0 0.0
    %132 = vmatpush1.xpose.msra.mxu0 0.0
    %133 = vmatprep.subr.mxu0 0.0
    %134 = vmatpush1.xpose.msra.mxu0 0.0
    %135 = vmatprep.subr.mxu0 0.0
    %136 = vmatpush1.xpose.msra.mxu0 0.0
    %137 = vmatprep.subr.mxu0 0.0
    %138 = vmatpush1.xpose.msra.mxu0 0.0
    %139 = vmatprep.subr.mxu0 0.0
    %140 = vmatpush1.xpose.msra.mxu0 0.0
    %141 = vmatprep.subr.mxu0 0.0
    %142 = vmatpush1.xpose.msra.mxu0 0.0
    %143 = vmatprep.subr.mxu0 0.0
    %144 = vmatpush1.xpose.msra.mxu0 0.0
    %145 = vmatprep.subr.mxu0 0.0
    %146 = vmatpush1.xpose.msra.mxu0 0.0
    %147 = vmatprep.mubr.f32.mxu0 %v67
    %148 = vmatmul.mubr.f32.gmra.mrb[0].mxu0 %v66
    %v149 = vpop.f32.mrb[0].mxu0
    %v150 = vadd.f32 0.0, %v149
    %v151 = vpop.f32.mrb[0].mxu0
    %152 = vdwg.mxu0
    %153 = vmatprep.subr.mxu0 %v69
    %154 = vmatpush1.xpose.msra.mxu0 %v68
    %155 = vmatprep.subr.mxu0 0.0
    %156 = vmatpush1.xpose.msra.mxu0 0.0
    %157 = vmatprep.subr.mxu0 0.0
    %158 = vmatpush1.xpose.msra.mxu0 0.0
    %159 = vmatprep.subr.mxu0 0.0
    %160 = vmatpush1.xpose.msra.mxu0 0.0
    %161 = vmatprep.subr.mxu0 0.0
    %162 = vmatpush1.xpose.msra.mxu0 0.0
    %163 = vmatprep.subr.mxu0 0.0
    %164 = vmatpush1.xpose.msra.mxu0 0.0
    %165 = vmatprep.subr.mxu0 0.0
    %166 = vmatpush1.xpose.msra.mxu0 0.0
    %167 = vmatprep.subr.mxu0 0.0
    %168 = vmatpush1.xpose.msra.mxu0 0.0
    %169 = vmatprep.subr.mxu0 0.0
    %170 = vmatpush1.xpose.msra.mxu0 0.0
    %171 = vmatprep.subr.mxu0 0.0
    %172 = vmatpush1.xpose.msra.mxu0 0.0
    %173 = vmatprep.subr.mxu0 0.0
    %174 = vmatpush1.xpose.msra.mxu0 0.0
    %175 = vmatprep.subr.mxu0 0.0
    %176 = vmatpush1.xpose.msra.mxu0 0.0
    %177 = vmatprep.subr.mxu0 0.0
    %178 = vmatpush1.xpose.msra.mxu0 0.0
    %179 = vmatprep.subr.mxu0 0.0
    %180 = vmatpush1.xpose.msra.mxu0 0.0
    %181 = vmatprep.subr.mxu0 0.0
    %182 = vmatpush1.xpose.msra.mxu0 0.0
    %183 = vmatprep.subr.mxu0 0.0
    %184 = vmatpush1.xpose.msra.mxu0 0.0
    %185 = vmatprep.subr.mxu0 0.0
    %186 = vmatpush1.xpose.msra.mxu0 0.0
    %187 = vmatprep.subr.mxu0 0.0
    %188 = vmatpush1.xpose.msra.mxu0 0.0
    %189 = vmatprep.subr.mxu0 0.0
    %190 = vmatpush1.xpose.msra.mxu0 0.0
    %191 = vmatprep.subr.mxu0 0.0
    %192 = vmatpush1.xpose.msra.mxu0 0.0
    %193 = vmatprep.subr.mxu0 0.0
    %194 = vmatpush1.xpose.msra.mxu0 0.0
    %195 = vmatprep.subr.mxu0 0.0
    %196 = vmatpush1.xpose.msra.mxu0 0.0
    %197 = vmatprep.subr.mxu0 0.0
    %198 = vmatpush1.xpose.msra.mxu0 0.0
    %199 = vmatprep.subr.mxu0 0.0
    %200 = vmatpush1.xpose.msra.mxu0 0.0
    %201 = vmatprep.subr.mxu0 0.0
    %202 = vmatpush1.xpose.msra.mxu0 0.0
    %203 = vmatprep.subr.mxu0 0.0
    %204 = vmatpush1.xpose.msra.mxu0 0.0
    %205 = vmatprep.subr.mxu0 0.0
    %206 = vmatpush1.xpose.msra.mxu0 0.0
    %207 = vmatprep.subr.mxu0 0.0
    %208 = vmatpush1.xpose.msra.mxu0 0.0
    %209 = vmatprep.subr.mxu0 0.0
    %210 = vmatpush1.xpose.msra.mxu0 0.0
    %211 = vmatprep.subr.mxu0 0.0
    %212 = vmatpush1.xpose.msra.mxu0 0.0
    %213 = vmatprep.subr.mxu0 0.0
    %214 = vmatpush1.xpose.msra.mxu0 0.0
    %215 = vmatprep.subr.mxu0 0.0
    %216 = vmatpush1.xpose.msra.mxu0 0.0
    %217 = vmatprep.mubr.f32.mxu0 %v69
    %218 = vmatmul.mubr.f32.gmra.mrb[0].mxu0 %v68
    %v219 = vpop.f32.mrb[0].mxu0
    %v220 = vadd.f32 %v150, %v219
    %v221 = vpop.f32.mrb[0].mxu0
    %222 = vdwg.mxu0
    %223 = vmatprep.subr.mxu0 %v71
    %224 = vmatpush1.xpose.msra.mxu0 %v70
    %225 = vmatprep.subr.mxu0 0.0
    %226 = vmatpush1.xpose.msra.mxu0 0.0
    %227 = vmatprep.subr.mxu0 0.0
    %228 = vmatpush1.xpose.msra.mxu0 0.0
    %229 = vmatprep.subr.mxu0 0.0
    %230 = vmatpush1.xpose.msra.mxu0 0.0
    %231 = vmatprep.subr.mxu0 0.0
    %232 = vmatpush1.xpose.msra.mxu0 0.0
    %233 = vmatprep.subr.mxu0 0.0
    %234 = vmatpush1.xpose.msra.mxu0 0.0
    %235 = vmatprep.subr.mxu0 0.0
    %236 = vmatpush1.xpose.msra.mxu0 0.0
    %237 = vmatprep.subr.mxu0 0.0
    %238 = vmatpush1.xpose.msra.mxu0 0.0
    %239 = vmatprep.subr.mxu0 0.0
    %240 = vmatpush1.xpose.msra.mxu0 0.0
    %241 = vmatprep.subr.mxu0 0.0
    %242 = vmatpush1.xpose.msra.mxu0 0.0
    %243 = vmatprep.subr.mxu0 0.0
    %244 = vmatpush1.xpose.msra.mxu0 0.0
    %245 = vmatprep.subr.mxu0 0.0
    %246 = vmatpush1.xpose.msra.mxu0 0.0
    %247 = vmatprep.subr.mxu0 0.0
    %248 = vmatpush1.xpose.msra.mxu0 0.0
    %249 = vmatprep.subr.mxu0 0.0
    %250 = vmatpush1.xpose.msra.mxu0 0.0
    %251 = vmatprep.subr.mxu0 0.0
    %252 = vmatpush1.xpose.msra.mxu0 0.0
    %253 = vmatprep.subr.mxu0 0.0
    %254 = vmatpush1.xpose.msra.mxu0 0.0
    %255 = vmatprep.subr.mxu0 0.0
    %256 = vmatpush1.xpose.msra.mxu0 0.0
    %257 = vmatprep.subr.mxu0 0.0
    %258 = vmatpush1.xpose.msra.mxu0 0.0
    %259 = vmatprep.subr.mxu0 0.0
    %260 = vmatpush1.xpose.msra.mxu0 0.0
    %261 = vmatprep.subr.mxu0 0.0
    %262 = vmatpush1.xpose.msra.mxu0 0.0
    %263 = vmatprep.subr.mxu0 0.0
    %264 = vmatpush1.xpose.msra.mxu0 0.0
    %265 = vmatprep.subr.mxu0 0.0
    %266 = vmatpush1.xpose.msra.mxu0 0.0
    %267 = vmatprep.subr.mxu0 0.0
    %268 = vmatpush1.xpose.msra.mxu0 0.0
    %269 = vmatprep.subr.mxu0 0.0
    %270 = vmatpush1.xpose.msra.mxu0 0.0
    %271 = vmatprep.subr.mxu0 0.0
    %272 = vmatpush1.xpose.msra.mxu0 0.0
    %273 = vmatprep.subr.mxu0 0.0
    %274 = vmatpush1.xpose.msra.mxu0 0.0
    %275 = vmatprep.subr.mxu0 0.0
    %276 = vmatpush1.xpose.msra.mxu0 0.0
    %277 = vmatprep.subr.mxu0 0.0
    %278 = vmatpush1.xpose.msra.mxu0 0.0
    %279 = vmatprep.subr.mxu0 0.0
    %280 = vmatpush1.xpose.msra.mxu0 0.0
    %281 = vmatprep.subr.mxu0 0.0
    %282 = vmatpush1.xpose.msra.mxu0 0.0
    %283 = vmatprep.subr.mxu0 0.0
    %284 = vmatpush1.xpose.msra.mxu0 0.0
    %285 = vmatprep.subr.mxu0 0.0
    %286 = vmatpush1.xpose.msra.mxu0 0.0
    %287 = vmatprep.mubr.f32.mxu0 %v71
    %288 = vmatmul.mubr.f32.gmra.mrb[0].mxu0 %v70
    %v289 = vpop.f32.mrb[0].mxu0
    %v290 = vadd.f32 %v220, %v289
    %v291 = vpop.f32.mrb[0].mxu0
    %292 = vdwg.mxu0
    %293 = vmatprep.subr.mxu0 %v73
    %294 = vmatpush1.xpose.msra.mxu0 %v72
    %295 = vmatprep.subr.mxu0 0.0
    %296 = vmatpush1.xpose.msra.mxu0 0.0
    %297 = vmatprep.subr.mxu0 0.0
    %298 = vmatpush1.xpose.msra.mxu0 0.0
    %299 = vmatprep.subr.mxu0 0.0
    %300 = vmatpush1.xpose.msra.mxu0 0.0
    %301 = vmatprep.subr.mxu0 0.0
    %302 = vmatpush1.xpose.msra.mxu0 0.0
    %303 = vmatprep.subr.mxu0 0.0
    %304 = vmatpush1.xpose.msra.mxu0 0.0
    %305 = vmatprep.subr.mxu0 0.0
    %306 = vmatpush1.xpose.msra.mxu0 0.0
    %307 = vmatprep.subr.mxu0 0.0
    %308 = vmatpush1.xpose.msra.mxu0 0.0
    %309 = vmatprep.subr.mxu0 0.0
    %310 = vmatpush1.xpose.msra.mxu0 0.0
    %311 = vmatprep.subr.mxu0 0.0
    %312 = vmatpush1.xpose.msra.mxu0 0.0
    %313 = vmatprep.subr.mxu0 0.0
    %314 = vmatpush1.xpose.msra.mxu0 0.0
    %315 = vmatprep.subr.mxu0 0.0
    %316 = vmatpush1.xpose.msra.mxu0 0.0
    %317 = vmatprep.subr.mxu0 0.0
    %318 = vmatpush1.xpose.msra.mxu0 0.0
    %319 = vmatprep.subr.mxu0 0.0
    %320 = vmatpush1.xpose.msra.mxu0 0.0
    %321 = vmatprep.subr.mxu0 0.0
    %322 = vmatpush1.xpose.msra.mxu0 0.0
    %323 = vmatprep.subr.mxu0 0.0
    %324 = vmatpush1.xpose.msra.mxu0 0.0
    %325 = vmatprep.subr.mxu0 0.0
    %326 = vmatpush1.xpose.msra.mxu0 0.0
    %327 = vmatprep.subr.mxu0 0.0
    %328 = vmatpush1.xpose.msra.mxu0 0.0
    %329 = vmatprep.subr.mxu0 0.0
    %330 = vmatpush1.xpose.msra.mxu0 0.0
    %331 = vmatprep.subr.mxu0 0.0
    %332 = vmatpush1.xpose.msra.mxu0 0.0
    %333 = vmatprep.subr.mxu0 0.0
    %334 = vmatpush1.xpose.msra.mxu0 0.0
    %335 = vmatprep.subr.mxu0 0.0
    %336 = vmatpush1.xpose.msra.mxu0 0.0
    %337 = vmatprep.subr.mxu0 0.0
    %338 = vmatpush1.xpose.msra.mxu0 0.0
    %339 = vmatprep.subr.mxu0 0.0
    %340 = vmatpush1.xpose.msra.mxu0 0.0
    %341 = vmatprep.subr.mxu0 0.0
    %342 = vmatpush1.xpose.msra.mxu0 0.0
    %343 = vmatprep.subr.mxu0 0.0
    %344 = vmatpush1.xpose.msra.mxu0 0.0
    %345 = vmatprep.subr.mxu0 0.0
    %346 = vmatpush1.xpose.msra.mxu0 0.0
    %347 = vmatprep.subr.mxu0 0.0
    %348 = vmatpush1.xpose.msra.mxu0 0.0
    %349 = vmatprep.subr.mxu0 0.0
    %350 = vmatpush1.xpose.msra.mxu0 0.0
    %351 = vmatprep.subr.mxu0 0.0
    %352 = vmatpush1.xpose.msra.mxu0 0.0
    %353 = vmatprep.subr.mxu0 0.0
    %354 = vmatpush1.xpose.msra.mxu0 0.0
    %355 = vmatprep.subr.mxu0 0.0
    %356 = vmatpush1.xpose.msra.mxu0 0.0
    %357 = vmatprep.mubr.f32.mxu0 %v73
    %358 = vmatmul.mubr.f32.gmra.mrb[0].mxu0 %v72
    %v359 = vpop.f32.mrb[0].mxu0
    %v360 = vadd.f32 %v290, %v359
    %v361 = vpop.f32.mrb[0].mxu0
    %362 = vdwg.mxu0
    %v363 = vadd.f32 %v82, %v360
    %vm364 = vcmask 64512
    %365 = vst.msk [vmem:[#allocation7] sm:$0xff] %vm364, %v363
    %v366 = vld [vmem:[#allocation8] sm:$0xff]
    %367 = vmatprep.subr.mxu0 %v75
    %368 = vmatpush1.xpose.msra.mxu0 %v74
    %369 = vmatprep.subr.mxu0 0.0
    %370 = vmatpush1.xpose.msra.mxu0 0.0
    %371 = vmatprep.subr.mxu0 0.0
    %372 = vmatpush1.xpose.msra.mxu0 0.0
    %373 = vmatprep.subr.mxu0 0.0
    %374 = vmatpush1.xpose.msra.mxu0 0.0
    %375 = vmatprep.subr.mxu0 0.0
    %376 = vmatpush1.xpose.msra.mxu0 0.0
    %377 = vmatprep.subr.mxu0 0.0
    %378 = vmatpush1.xpose.msra.mxu0 0.0
    %379 = vmatprep.subr.mxu0 0.0
    %380 = vmatpush1.xpose.msra.mxu0 0.0
    %381 = vmatprep.subr.mxu0 0.0
    %382 = vmatpush1.xpose.msra.mxu0 0.0
    %383 = vmatprep.subr.mxu0 0.0
    %384 = vmatpush1.xpose.msra.mxu0 0.0
    %385 = vmatprep.subr.mxu0 0.0
    %386 = vmatpush1.xpose.msra.mxu0 0.0
    %387 = vmatprep.subr.mxu0 0.0
    %388 = vmatpush1.xpose.msra.mxu0 0.0
    %389 = vmatprep.subr.mxu0 0.0
    %390 = vmatpush1.xpose.msra.mxu0 0.0
    %391 = vmatprep.subr.mxu0 0.0
    %392 = vmatpush1.xpose.msra.mxu0 0.0
    %393 = vmatprep.subr.mxu0 0.0
    %394 = vmatpush1.xpose.msra.mxu0 0.0
    %395 = vmatprep.subr.mxu0 0.0
    %396 = vmatpush1.xpose.msra.mxu0 0.0
    %397 = vmatprep.subr.mxu0 0.0
    %398 = vmatpush1.xpose.msra.mxu0 0.0
    %399 = vmatprep.subr.mxu0 0.0
    %400 = vmatpush1.xpose.msra.mxu0 0.0
    %401 = vmatprep.subr.mxu0 0.0
    %402 = vmatpush1.xpose.msra.mxu0 0.0
    %403 = vmatprep.subr.mxu0 0.0
    %404 = vmatpush1.xpose.msra.mxu0 0.0
    %405 = vmatprep.subr.mxu0 0.0
    %406 = vmatpush1.xpose.msra.mxu0 0.0
    %407 = vmatprep.subr.mxu0 0.0
    %408 = vmatpush1.xpose.msra.mxu0 0.0
    %409 = vmatprep.subr.mxu0 0.0
    %410 = vmatpush1.xpose.msra.mxu0 0.0
    %411 = vmatprep.subr.mxu0 0.0
    %412 = vmatpush1.xpose.msra.mxu0 0.0
    %413 = vmatprep.subr.mxu0 0.0
    %414 = vmatpush1.xpose.msra.mxu0 0.0
    %415 = vmatprep.subr.mxu0 0.0
    %416 = vmatpush1.xpose.msra.mxu0 0.0
    %417 = vmatprep.subr.mxu0 0.0
    %418 = vmatpush1.xpose.msra.mxu0 0.0
    %419 = vmatprep.subr.mxu0 0.0
    %420 = vmatpush1.xpose.msra.mxu0 0.0
    %421 = vmatprep.subr.mxu0 0.0
    %422 = vmatpush1.xpose.msra.mxu0 0.0
    %423 = vmatprep.subr.mxu0 0.0
    %424 = vmatpush1.xpose.msra.mxu0 0.0
    %425 = vmatprep.subr.mxu0 0.0
    %426 = vmatpush1.xpose.msra.mxu0 0.0
    %427 = vmatprep.subr.mxu0 0.0
    %428 = vmatpush1.xpose.msra.mxu0 0.0
    %429 = vmatprep.subr.mxu0 0.0
    %430 = vmatpush1.xpose.msra.mxu0 0.0
    %431 = vmatprep.mubr.f32.mxu0 %v75
    %432 = vmatmul.mubr.f32.gmra.mrb[0].mxu0 %v74
    %v433 = vpop.f32.mrb[0].mxu0
    %v434 = vadd.f32 0.0, %v433
    %v435 = vpop.f32.mrb[0].mxu0
    %436 = vdwg.mxu0
    %437 = vmatprep.subr.mxu0 %v77
    %438 = vmatpush1.xpose.msra.mxu0 %v76
    %439 = vmatprep.subr.mxu0 0.0
    %440 = vmatpush1.xpose.msra.mxu0 0.0
    %441 = vmatprep.subr.mxu0 0.0
    %442 = vmatpush1.xpose.msra.mxu0 0.0
    %443 = vmatprep.subr.mxu0 0.0
    %444 = vmatpush1.xpose.msra.mxu0 0.0
    %445 = vmatprep.subr.mxu0 0.0
    %446 = vmatpush1.xpose.msra.mxu0 0.0
    %447 = vmatprep.subr.mxu0 0.0
    %448 = vmatpush1.xpose.msra.mxu0 0.0
    %449 = vmatprep.subr.mxu0 0.0
    %450 = vmatpush1.xpose.msra.mxu0 0.0
    %451 = vmatprep.subr.mxu0 0.0
    %452 = vmatpush1.xpose.msra.mxu0 0.0
    %453 = vmatprep.subr.mxu0 0.0
    %454 = vmatpush1.xpose.msra.mxu0 0.0
    %455 = vmatprep.subr.mxu0 0.0
    %456 = vmatpush1.xpose.msra.mxu0 0.0
    %457 = vmatprep.subr.mxu0 0.0
    %458 = vmatpush1.xpose.msra.mxu0 0.0
    %459 = vmatprep.subr.mxu0 0.0
    %460 = vmatpush1.xpose.msra.mxu0 0.0
    %461 = vmatprep.subr.mxu0 0.0
    %462 = vmatpush1.xpose.msra.mxu0 0.0
    %463 = vmatprep.subr.mxu0 0.0
    %464 = vmatpush1.xpose.msra.mxu0 0.0
    %465 = vmatprep.subr.mxu0 0.0
    %466 = vmatpush1.xpose.msra.mxu0 0.0
    %467 = vmatprep.subr.mxu0 0.0
    %468 = vmatpush1.xpose.msra.mxu0 0.0
    %469 = vmatprep.subr.mxu0 0.0
    %470 = vmatpush1.xpose.msra.mxu0 0.0
    %471 = vmatprep.subr.mxu0 0.0
    %472 = vmatpush1.xpose.msra.mxu0 0.0
    %473 = vmatprep.subr.mxu0 0.0
    %474 = vmatpush1.xpose.msra.mxu0 0.0
    %475 = vmatprep.subr.mxu0 0.0
    %476 = vmatpush1.xpose.msra.mxu0 0.0
    %477 = vmatprep.subr.mxu0 0.0
    %478 = vmatpush1.xpose.msra.mxu0 0.0
    %479 = vmatprep.subr.mxu0 0.0
    %480 = vmatpush1.xpose.msra.mxu0 0.0
    %481 = vmatprep.subr.mxu0 0.0
    %482 = vmatpush1.xpose.msra.mxu0 0.0
    %483 = vmatprep.subr.mxu0 0.0
    %484 = vmatpush1.xpose.msra.mxu0 0.0
    %485 = vmatprep.subr.mxu0 0.0
    %486 = vmatpush1.xpose.msra.mxu0 0.0
    %487 = vmatprep.subr.mxu0 0.0
    %488 = vmatpush1.xpose.msra.mxu0 0.0
    %489 = vmatprep.subr.mxu0 0.0
    %490 = vmatpush1.xpose.msra.mxu0 0.0
    %491 = vmatprep.subr.mxu0 0.0
    %492 = vmatpush1.xpose.msra.mxu0 0.0
    %493 = vmatprep.subr.mxu0 0.0
    %494 = vmatpush1.xpose.msra.mxu0 0.0
    %495 = vmatprep.subr.mxu0 0.0
    %496 = vmatpush1.xpose.msra.mxu0 0.0
    %497 = vmatprep.subr.mxu0 0.0
    %498 = vmatpush1.xpose.msra.mxu0 0.0
    %499 = vmatprep.subr.mxu0 0.0
    %500 = vmatpush1.xpose.msra.mxu0 0.0
    %501 = vmatprep.mubr.f32.mxu0 %v77
    %502 = vmatmul.mubr.f32.gmra.mrb[0].mxu0 %v76
    %v503 = vpop.f32.mrb[0].mxu0
    %v504 = vadd.f32 %v434, %v503
    %v505 = vpop.f32.mrb[0].mxu0
    %506 = vdwg.mxu0
    %507 = vmatprep.subr.mxu0 %v79
    %508 = vmatpush1.xpose.msra.mxu0 %v78
    %509 = vmatprep.subr.mxu0 0.0
    %510 = vmatpush1.xpose.msra.mxu0 0.0
    %511 = vmatprep.subr.mxu0 0.0
    %512 = vmatpush1.xpose.msra.mxu0 0.0
    %513 = vmatprep.subr.mxu0 0.0
    %514 = vmatpush1.xpose.msra.mxu0 0.0
    %515 = vmatprep.subr.mxu0 0.0
    %516 = vmatpush1.xpose.msra.mxu0 0.0
    %517 = vmatprep.subr.mxu0 0.0
    %518 = vmatpush1.xpose.msra.mxu0 0.0
    %519 = vmatprep.subr.mxu0 0.0
    %520 = vmatpush1.xpose.msra.mxu0 0.0
    %521 = vmatprep.subr.mxu0 0.0
    %522 = vmatpush1.xpose.msra.mxu0 0.0
    %523 = vmatprep.subr.mxu0 0.0
    %524 = vmatpush1.xpose.msra.mxu0 0.0
    %525 = vmatprep.subr.mxu0 0.0
    %526 = vmatpush1.xpose.msra.mxu0 0.0
    %527 = vmatprep.subr.mxu0 0.0
    %528 = vmatpush1.xpose.msra.mxu0 0.0
    %529 = vmatprep.subr.mxu0 0.0
    %530 = vmatpush1.xpose.msra.mxu0 0.0
    %531 = vmatprep.subr.mxu0 0.0
    %532 = vmatpush1.xpose.msra.mxu0 0.0
    %533 = vmatprep.subr.mxu0 0.0
    %534 = vmatpush1.xpose.msra.mxu0 0.0
    %535 = vmatprep.subr.mxu0 0.0
    %536 = vmatpush1.xpose.msra.mxu0 0.0
    %537 = vmatprep.subr.mxu0 0.0
    %538 = vmatpush1.xpose.msra.mxu0 0.0
    %539 = vmatprep.subr.mxu0 0.0
    %540 = vmatpush1.xpose.msra.mxu0 0.0
    %541 = vmatprep.subr.mxu0 0.0
    %542 = vmatpush1.xpose.msra.mxu0 0.0
    %543 = vmatprep.subr.mxu0 0.0
    %544 = vmatpush1.xpose.msra.mxu0 0.0
    %545 = vmatprep.subr.mxu0 0.0
    %546 = vmatpush1.xpose.msra.mxu0 0.0
    %547 = vmatprep.subr.mxu0 0.0
    %548 = vmatpush1.xpose.msra.mxu0 0.0
    %549 = vmatprep.subr.mxu0 0.0
    %550 = vmatpush1.xpose.msra.mxu0 0.0
    %551 = vmatprep.subr.mxu0 0.0
    %552 = vmatpush1.xpose.msra.mxu0 0.0
    %553 = vmatprep.subr.mxu0 0.0
    %554 = vmatpush1.xpose.msra.mxu0 0.0
    %555 = vmatprep.subr.mxu0 0.0
    %556 = vmatpush1.xpose.msra.mxu0 0.0
    %557 = vmatprep.subr.mxu0 0.0
    %558 = vmatpush1.xpose.msra.mxu0 0.0
    %559 = vmatprep.subr.mxu0 0.0
    %560 = vmatpush1.xpose.msra.mxu0 0.0
    %561 = vmatprep.subr.mxu0 0.0
    %562 = vmatpush1.xpose.msra.mxu0 0.0
    %563 = vmatprep.subr.mxu0 0.0
    %564 = vmatpush1.xpose.msra.mxu0 0.0
    %565 = vmatprep.subr.mxu0 0.0
    %566 = vmatpush1.xpose.msra.mxu0 0.0
    %567 = vmatprep.subr.mxu0 0.0
    %568 = vmatpush1.xpose.msra.mxu0 0.0
    %569 = vmatprep.subr.mxu0 0.0
    %570 = vmatpush1.xpose.msra.mxu0 0.0
    %571 = vmatprep.mubr.f32.mxu0 %v79
    %572 = vmatmul.mubr.f32.gmra.mrb[0].mxu0 %v78
    %v573 = vpop.f32.mrb[0].mxu0
    %v574 = vadd.f32 %v504, %v573
    %v575 = vpop.f32.mrb[0].mxu0
    %576 = vdwg.mxu0
    %577 = vmatprep.subr.mxu0 %v81
    %578 = vmatpush1.xpose.msra.mxu0 %v80
    %579 = vmatprep.subr.mxu0 0.0
    %580 = vmatpush1.xpose.msra.mxu0 0.0
    %581 = vmatprep.subr.mxu0 0.0
    %582 = vmatpush1.xpose.msra.mxu0 0.0
    %583 = vmatprep.subr.mxu0 0.0
    %584 = vmatpush1.xpose.msra.mxu0 0.0
    %585 = vmatprep.subr.mxu0 0.0
    %586 = vmatpush1.xpose.msra.mxu0 0.0
    %587 = vmatprep.subr.mxu0 0.0
    %588 = vmatpush1.xpose.msra.mxu0 0.0
    %589 = vmatprep.subr.mxu0 0.0
    %590 = vmatpush1.xpose.msra.mxu0 0.0
    %591 = vmatprep.subr.mxu0 0.0
    %592 = vmatpush1.xpose.msra.mxu0 0.0
    %593 = vmatprep.subr.mxu0 0.0
    %594 = vmatpush1.xpose.msra.mxu0 0.0
    %595 = vmatprep.subr.mxu0 0.0
    %596 = vmatpush1.xpose.msra.mxu0 0.0
    %597 = vmatprep.subr.mxu0 0.0
    %598 = vmatpush1.xpose.msra.mxu0 0.0
    %599 = vmatprep.subr.mxu0 0.0
    %600 = vmatpush1.xpose.msra.mxu0 0.0
    %601 = vmatprep.subr.mxu0 0.0
    %602 = vmatpush1.xpose.msra.mxu0 0.0
    %603 = vmatprep.subr.mxu0 0.0
    %604 = vmatpush1.xpose.msra.mxu0 0.0
    %605 = vmatprep.subr.mxu0 0.0
    %606 = vmatpush1.xpose.msra.mxu0 0.0
    %607 = vmatprep.subr.mxu0 0.0
    %608 = vmatpush1.xpose.msra.mxu0 0.0
    %609 = vmatprep.subr.mxu0 0.0
    %610 = vmatpush1.xpose.msra.mxu0 0.0
    %611 = vmatprep.subr.mxu0 0.0
    %612 = vmatpush1.xpose.msra.mxu0 0.0
    %613 = vmatprep.subr.mxu0 0.0
    %614 = vmatpush1.xpose.msra.mxu0 0.0
    %615 = vmatprep.subr.mxu0 0.0
    %616 = vmatpush1.xpose.msra.mxu0 0.0
    %617 = vmatprep.subr.mxu0 0.0
    %618 = vmatpush1.xpose.msra.mxu0 0.0
    %619 = vmatprep.subr.mxu0 0.0
    %620 = vmatpush1.xpose.msra.mxu0 0.0
    %621 = vmatprep.subr.mxu0 0.0
    %622 = vmatpush1.xpose.msra.mxu0 0.0
    %623 = vmatprep.subr.mxu0 0.0
    %624 = vmatpush1.xpose.msra.mxu0 0.0
    %625 = vmatprep.subr.mxu0 0.0
    %626 = vmatpush1.xpose.msra.mxu0 0.0
    %627 = vmatprep.subr.mxu0 0.0
    %628 = vmatpush1.xpose.msra.mxu0 0.0
    %629 = vmatprep.subr.mxu0 0.0
    %630 = vmatpush1.xpose.msra.mxu0 0.0
    %631 = vmatprep.subr.mxu0 0.0
    %632 = vmatpush1.xpose.msra.mxu0 0.0
    %633 = vmatprep.subr.mxu0 0.0
    %634 = vmatpush1.xpose.msra.mxu0 0.0
    %635 = vmatprep.subr.mxu0 0.0
    %636 = vmatpush1.xpose.msra.mxu0 0.0
    %637 = vmatprep.subr.mxu0 0.0
    %638 = vmatpush1.xpose.msra.mxu0 0.0
    %639 = vmatprep.subr.mxu0 0.0
    %640 = vmatpush1.xpose.msra.mxu0 0.0
    %641 = vmatprep.mubr.f32.mxu0 %v81
    %642 = vmatmul.mubr.f32.gmra.mrb[0].mxu0 %v80
    %v643 = vpop.f32.mrb[0].mxu0
    %v644 = vadd.f32 %v574, %v643
    %v645 = vpop.f32.mrb[0].mxu0
    %646 = vdwg.mxu0
    %v647 = vadd.f32 %v366, %v644
    %648 = vst.msk [vmem:[#allocation8] sm:$0xff] %vm364, %v647
    // Predicated region
    $region22: #{tpu_custom_call.1} parent=1 // pred_check
      _
    $region23: #{tpu_custom_call.1} parent=1 // pred_check_branch
      %650 = sbr.rel (0) target = $region25
    $region24: #{tpu_custom_call.1} parent=1 // pred_region
      %s652 = ssub.s32 128, 128
      %653 = vsyncadd [#allocation4], %s652
      %s655 = sshll.u32 [#allocation7], 4
      %s656 = int_to_ptr.vmem [resolvable:$true] %s655
      %658 = dma.vmem_to_hbm [thread:$0]  %s656, 128, %s2, [#allocation4]
    $region25: #{tpu_custom_call.1} parent=1 // pred_fallthru
      _
    // Predicated region
    $region26: #{tpu_custom_call.1} parent=1 // pred_check
      _
    $region27: #{tpu_custom_call.1} parent=1 // pred_check_branch
      %660 = sbr.rel (0) target = $region29
    $region28: #{tpu_custom_call.1} parent=1 // pred_region
      %s662 = ssub.s32 128, 128
      %663 = vsyncadd [#allocation9], %s662
      %s665 = sshll.u32 [#allocation8], 4
      %s666 = int_to_ptr.vmem [resolvable:$true] %s665
      %668 = dma.vmem_to_hbm [thread:$0]  %s666, 128, %s3, [#allocation9]
    $region29: #{tpu_custom_call.1} parent=1 // pred_fallthru
      _
    // Predicated region
    $region30: #{tpu_custom_call.1} parent=1 // pred_check
      _
    $region31: #{tpu_custom_call.1} parent=1 // pred_check_branch
      %670 = sbr.rel (0) target = $region33
    $region32: #{tpu_custom_call.1} parent=1 // pred_region
      %671 = dma.done [#allocation4], 128
    $region33: #{tpu_custom_call.1} parent=1 // pred_fallthru
      _
    // Predicated region
    $region34: #{tpu_custom_call.1} parent=1 // pred_check
      _
    $region35: #{tpu_custom_call.1} parent=1 // pred_check_branch
      %673 = sbr.rel (0) target = $region37
    $region36: #{tpu_custom_call.1} parent=1 // pred_region
      %674 = dma.done [#allocation9], 128
    $region37: #{tpu_custom_call.1} parent=1 // pred_fallthru
      _
    %675 = vsyncpa [#allocation3], 1
    %676 = vsyncpa [#allocation6], 1
    %677 = vsyncpa [#allocation4], 1
    %678 = vsyncpa [#allocation9], 1

</llo_original>
